<compile_context>
chip_gen: v5e
topology: v5e:2x2
jax: 0.10.0
libtpu: 0.0.40
codegen_flags: <defaults>
</compile_context>

<pallas_src>
import functools
import math

import jax
import jax.numpy as jnp
from jax import lax
from jax.experimental import pallas as pl
from jax.experimental.pallas import tpu as pltpu


# ---------------------------------------------------------------------------
# Counter-based PRNG (pure integer VPU ops -> lowers on Mosaic AND interpret).
# ---------------------------------------------------------------------------
def _mix32(x):
    """splitmix32/murmur3-style 32-bit avalanche.  uint32 in / uint32 out."""
    x = x ^ (x >> 16)
    x = x * jnp.uint32(0x7FEB352D)
    x = x ^ (x >> 15)
    x = x * jnp.uint32(0x846CA68B)
    x = x ^ (x >> 16)
    return x


def _dropout_threshold(p):
    """24-bit drop threshold: P(keep) = 1 - thr / 2^24 ~= 1 - p."""
    return min(int(float(p) * (1 << 24)), (1 << 24) - 1)


def _keep_from_index(idx_u32, seed_u32, thr_i32):
    """Deterministic Bernoulli(1-p) keep decision from per-element counters."""
    h = _mix32(idx_u32 ^ (seed_u32 * jnp.uint32(0x9E3779B9)))
    return (h >> 8).astype(jnp.int32) >= thr_i32


def _keep_mask_reference(seed, S, B, D, p):
    """Pure-JAX replica of the in-kernel dropout mask (tiling-invariant)."""
    thr = jnp.int32(_dropout_threshold(p))
    r = jnp.arange(S, dtype=jnp.uint32)[:, None]
    c = jnp.arange(B * D, dtype=jnp.uint32)[None, :]
    idx = r * jnp.uint32(B * D) + c
    return _keep_from_index(idx, jnp.uint32(seed), thr).reshape(S, B, D)


# ---------------------------------------------------------------------------
# pe table, exactly as the torch __init__ builds it.
# ---------------------------------------------------------------------------
def make_positional_encoding_table(max_len, d_model):
    position = jnp.arange(max_len, dtype=jnp.float32)[:, None]            # (max_len, 1)
    div_term = jnp.exp(
        jnp.arange(0, d_model, 2, dtype=jnp.float32) * (-math.log(10000.0) / d_model)
    )                                                                      # (d_model/2,)
    pe = jnp.zeros((max_len, d_model), dtype=jnp.float32)
    pe = pe.at[:, 0::2].set(jnp.sin(position * div_term))
    pe = pe.at[:, 1::2].set(jnp.cos(position * div_term))
    return pe[:, None, :]                                                  # (max_len, 1, d_model)


# ---------------------------------------------------------------------------
# Kernel
# ---------------------------------------------------------------------------
def _pos_enc_kernel(seed_ref, x_ref, pe_ref, o_ref, *, p, training, batch, thr):
    """One S-tile of  out = dropout(x + pe).

    seed_ref: SMEM (1,) int32            (scalar prefetch)
    x_ref   : VMEM (tS, B*D)             seq rows on sublanes, batch*d_model on lanes
    pe_ref  : VMEM (tS, D)               one copy per sequence row
    o_ref   : VMEM (tS, B*D)
    """
    x = x_ref[...]
    pe = pe_ref[...].astype(x.dtype)
    if batch > 1:
        # Replicate pe across the `batch` lane groups (cheap; hides under DMA).
        pe = jnp.concatenate([pe] * batch, axis=-1)
    y = x + pe

    if training and p > 0.0:
        rows, width = y.shape
        row0 = pl.program_id(0) * rows
        r = (lax.broadcasted_iota(jnp.int32, y.shape, 0) + row0).astype(jnp.uint32)
        c = lax.broadcasted_iota(jnp.int32, y.shape, 1).astype(jnp.uint32)
        idx = r * jnp.uint32(width) + c                    # global element counter
        keep = _keep_from_index(idx, seed_ref[0].astype(jnp.uint32), jnp.int32(thr))
        # Inverted dropout; keep*scale in f32 so bf16 outputs stay unbiased.
        scale = jnp.float32(1.0 / (1.0 - p))
        y = jnp.where(keep, y.astype(jnp.float32) * scale, jnp.float32(0.0))

    o_ref[...] = y.astype(o_ref.dtype)


# ---------------------------------------------------------------------------
# Wrapper
# ---------------------------------------------------------------------------
def _device_defaults():
    kind = ""
    try:
        kind = jax.devices()[0].device_kind.lower()
    except Exception:
        pass
    vmem_cap = 64 * 1024 * 1024                 # assume the tightest (v7x-class) VMEM
    try:
        info = pltpu.get_tpu_info()
        vmem_cap = int(getattr(info, "vmem_capacity_bytes", vmem_cap))
    except Exception:
        pass
    return kind, vmem_cap


def _pick_seq_tile(S, row_bytes, target_bytes, sub):
    """Sequence rows per tile: ~target_bytes of x per tile, a multiple of `sub`
    sublanes (dense vregs / unmasked stores), preferring a divisor of S so the
    final grid step is not a ragged, masked block."""
    tS = max(sub, (target_bytes // max(1, row_bytes)) // sub * sub)
    if tS >= S:
        return S
    cand = tS
    while cand >= max(sub, tS // 2):
        if S % cand == 0:
            return cand
        cand -= sub
    return tS


def positional_encoding(x, pe, *, p=0.1, training=False, seed=0,
                        seq_tile=None, force_kernel=False):
    """x: (seq_len, batch, d_model); pe: (max_len, 1, d_model) float32.

    Output dtype follows x.  NOTE: callers must vary `seed` across layers /
    steps, otherwise identical dropout masks are reused.
    """
    S, B, D = x.shape
    if training and p >= 1.0:
        return jnp.zeros_like(x)                 # torch: dropout(p=1) zeros everything
    if (not training or p == 0.0) and not force_kernel:
        # Inference / no-dropout: a plain JAX add fuses into neighbouring XLA
        # ops, saving an extra HBM read+write of the (S, B, D) tensor.
        return x + pe[:S].astype(x.dtype)

    itemsize = jnp.dtype(x.dtype).itemsize
    sub = max(8, 32 // itemsize)                 # sublane pack: 8 f32, 16 bf16
    kind, vmem_cap = _device_defaults()
    target_tile = max(1 << 20, min(8 << 20, vmem_cap // 16))   # ~4 MiB v7x, ~8 MiB v5e/v6e

    # Lane-dense view: rows = sequence positions, cols = (batch, d_model).
    # Both reshapes are free (contiguous); the output is reshaped back below.
    # TODO(synk): extremely large B*d_model rows (>> a few MiB each) would need
    # a second (lane) grid axis; not needed for transformer-sized shapes.
    W = B * D
    x2 = x.reshape(S, W)
    pe2 = pe.reshape(pe.shape[0], D)

    if seq_tile is not None:
        tS = int(min(max(1, seq_tile), S))
        if tS < S:
            tS = max(sub, (tS // sub) * sub)
    else:
        tS = _pick_seq_tile(S, W * itemsize, target_tile, sub)

    if tS % 8 != 0 and tS != pe2.shape[0]:
        # Only possible when tS == S and S is small/unaligned: slice pe so the
        # (tS, D) block equals the full array extent (keeps the block legal).
        pe2 = pe2[:S]

    grid_steps = pl.cdiv(S, tS)
    if "v7" in kind and grid_steps >= 2:
        dims = (pltpu.CORE_PARALLEL,)            # split the S loop across v7x's 2 TCs
    else:
        dims = (pltpu.PARALLEL,)

    tile_bytes = tS * W * itemsize
    vmem_limit = int(min(vmem_cap * 3 // 4, max(32 << 20, 8 * tile_bytes)))

    kernel = functools.partial(
        _pos_enc_kernel, p=float(p), training=bool(training),
        batch=B, thr=_dropout_threshold(p))
    seed_arr = jnp.asarray([seed], dtype=jnp.int32)

    cost = pl.CostEstimate(
        flops=S * W * (12 if (training and p > 0.0) else 1),
        transcendentals=0,
        bytes_accessed=2 * S * W * itemsize + S * D * pe2.dtype.itemsize,
    )

    out2 = pl.pallas_call(
        kernel,
        out_shape=jax.ShapeDtypeStruct((S, W), x.dtype),
        grid_spec=pltpu.PrefetchScalarGridSpec(
            num_scalar_prefetch=1,               # seed lands in SMEM
            grid=(grid_steps,),
            in_specs=[
                pl.BlockSpec((tS, W), lambda i, seed_ref: (i, 0)),   # x tile
                pl.BlockSpec((tS, D), lambda i, seed_ref: (i, 0)),   # pe tile
            ],
            out_specs=pl.BlockSpec((tS, W), lambda i, seed_ref: (i, 0)),
        ),
        compiler_params=pltpu.CompilerParams(
            dimension_semantics=dims,
            vmem_limit_bytes=vmem_limit,
        ),
        cost_estimate=cost,
    )(seed_arr, x2, pe2)
    return out2.reshape(S, B, D)


if __name__ == "__main__":
    # Small shapes implied by the forward: seq-first transformer input.
    seq_len, batch, d_model, max_len = 8, 2, 128, 16

    key = jax.random.PRNGKey(0)
    x = jax.random.normal(key, (seq_len, batch, d_model), dtype=jnp.float32)
    pe = make_positional_encoding_table(max_len, d_model)
    ref = x + pe[:seq_len]

    # --- Eval mode: short-circuit (fused JAX) and forced-kernel paths agree. ---
    out_fast = jax.block_until_ready(positional_encoding(x, pe, p=0.1, training=False))
    out_kern = jax.block_until_ready(
        positional_encoding(x, pe, p=0.1, training=False, force_kernel=True))
    assert out_kern.shape == x.shape and out_kern.dtype == x.dtype
    assert jnp.allclose(out_fast, ref, atol=1e-6, rtol=1e-6)
    assert jnp.allclose(out_kern, ref, atol=1e-6, rtol=1e-6)

    # --- Multi-tile grid (several S blocks), lane-dense B*D = 512. ---
    S2, B2, D2 = 64, 4, 128
    x2 = jax.random.normal(jax.random.PRNGKey(1), (S2, B2, D2), dtype=jnp.float32)
    pe2 = make_positional_encoding_table(128, D2)
    out2 = jax.block_until_ready(
        positional_encoding(x2, pe2, training=False, force_kernel=True, seq_tile=16))
    assert jnp.allclose(out2, x2 + pe2[:S2], atol=1e-6, rtol=1e-6)

    # --- Small, non-128 d_model (lane-padded but legal full-extent blocks). ---
    S3, B3, D3 = 16, 2, 32
    x3 = jax.random.normal(jax.random.PRNGKey(2), (S3, B3, D3), dtype=jnp.float32)
    pe3 = make_positional_encoding_table(32, D3)
    out3 = jax.block_until_ready(
        positional_encoding(x3, pe3, training=False, force_kernel=True, seq_tile=8))
    assert jnp.allclose(out3, x3 + pe3[:S3], atol=1e-6, rtol=1e-6)

    # --- Training mode: exact match vs the pure-JAX replica of the hash mask. ---
    # TODO(synk): torch's dropout RNG stream (Philox) cannot be reproduced
    # bit-exactly; the mask here is Bernoulli(1-p) from a counter-based hash.
    p_drop = 0.5
    scale = jnp.float32(1.0 / (1.0 - p_drop))
    out_tr = jax.block_until_ready(
        positional_encoding(x, pe, p=p_drop, training=True, seed=123))
    keep = _keep_mask_reference(123, seq_len, batch, d_model, p_drop)
    ref_tr = jnp.where(keep, ref * scale, 0.0)
    assert jnp.allclose(out_tr, ref_tr, atol=1e-5, rtol=1e-5)
    zero_frac = float(jnp.mean((out_tr == 0.0).astype(jnp.float32)))
    assert 0.35 < zero_frac < 0.65
    out_tr_b = jax.block_until_ready(
        positional_encoding(x, pe, p=p_drop, training=True, seed=7))
    assert not bool(jnp.array_equal(out_tr, out_tr_b))      # seed changes the mask

    # Training on the small-d_model shapes, multi-tile, same tiling-invariant mask.
    out_tr3 = jax.block_until_ready(
        positional_encoding(x3, pe3, p=p_drop, training=True, seed=5, seq_tile=8))
    keep3 = _keep_mask_reference(5, S3, B3, D3, p_drop)
    assert jnp.allclose(out_tr3, jnp.where(keep3, (x3 + pe3[:S3]) * scale, 0.0),
                        atol=1e-5, rtol=1e-5)

    # --- p >= 1 guard: everything dropped. ---
    assert bool(jnp.all(positional_encoding(x, pe, p=1.0, training=True) == 0.0))

    print("KERNEL_OK")
</pallas_src>

<mosaic_0001>
module attributes {stable_mosaic.version = 11 : i64} {
  func.func @_pos_enc_kernel(%arg0: i32, %arg1: memref<1xi32, #tpu.memory_space<smem>>, %arg2: memref<8x256xf32, #tpu.memory_space<vmem>>, %arg3: memref<8x128xf32, #tpu.memory_space<vmem>>, %arg4: memref<8x256xf32, #tpu.memory_space<vmem>>) attributes {dimension_semantics = [#tpu.dimension_semantics<parallel>], iteration_bounds = array<i64: 1>, scalar_prefetch = 1 : i64, scratch_operands = 0 : i64, tpu.core_type = #tpu.core_type<tc>, window_params = [{transform_indices = @transform_0, window_bounds = array<i64: 8, 256>}, {transform_indices = @transform_1, window_bounds = array<i64: 8, 128>}, {transform_indices = @transform_2, window_bounds = array<i64: 8, 256>}]} {
    %c0 = arith.constant 0 : index
    %c0_0 = arith.constant 0 : index
    %0 = vector.load %arg2[%c0, %c0_0] : memref<8x256xf32, #tpu.memory_space<vmem>>, vector<8x256xf32>
    %c0_1 = arith.constant 0 : index
    %c0_2 = arith.constant 0 : index
    %1 = vector.load %arg3[%c0_1, %c0_2] : memref<8x128xf32, #tpu.memory_space<vmem>>, vector<8x128xf32>
    %2 = tpu.concatenate %1, %1 in 1 : vector<8x128xf32>, vector<8x128xf32> -> vector<8x256xf32>
    %3 = arith.addf %0, %2 : vector<8x256xf32>
    %c0_3 = arith.constant 0 : index
    %c0_4 = arith.constant 0 : index
    %4 = vector.load %arg4[%c0_3, %c0_4] : memref<8x256xf32, #tpu.memory_space<vmem>>, vector<8x256xf32>
    tpu.vector_store %arg4[%c0_3, %c0_4], %3 {strides = array<i32>} : memref<8x256xf32, #tpu.memory_space<vmem>>, vector<8x256xf32>,
    return
  }
  func.func @transform_0(%arg0: i32, %arg1: memref<1xi32, #tpu.memory_space<smem>>) -> (i32, i32) {
    %c0_i32 = arith.constant 0 : i32
    %c0_i32_0 = arith.constant 0 : i32
    return %arg0, %c0_i32 : i32, i32
  }
  func.func @transform_1(%arg0: i32, %arg1: memref<1xi32, #tpu.memory_space<smem>>) -> (i32, i32) {
    %c0_i32 = arith.constant 0 : i32
    %c0_i32_0 = arith.constant 0 : i32
    return %arg0, %c0_i32 : i32, i32
  }
  func.func @transform_2(%arg0: i32, %arg1: memref<1xi32, #tpu.memory_space<smem>>) -> (i32, i32) {
    %c0_i32 = arith.constant 0 : i32
    %c0_i32_0 = arith.constant 0 : i32
    return %arg0, %c0_i32 : i32, i32
  }
}

</mosaic_0001>

<llo_original>
// kernel: tpu_custom_call.1
$region0: #{tpu_custom_call.1}
  #allocation0 [shape = 'u32[]', space=smem, size = 0x4, offset = 0x4, fixed_abs, tag = 'smem constant byte address 0x4 - core index']
  #allocation1 [shape = 'u32[72,128]{1,0:T(1,128)}', space=vmem, size = 0x9000, scoped, tag = 'internal scratch']
  #allocation2 [shape = 's32[1]{0}', space=sflag, size = 0x4, scoped, tag = 'scoped memory for tpu_custom_call.1']
  #allocation3 [shape = 's32[1]{0:T(128)S(6)}', space=smem, size = 0x200, scoped, tag = 'prefetched SMEM operand 0']
  %s0 = inlined_call_operand.<no memory space> [shape: s32[1], index: 0, kind: input, shape index: {}]
  %s1 = inlined_call_operand.hbm [shape: f32[8,256], index: 1, kind: input, shape index: {}]
  %s2 = inlined_call_operand.hbm [shape: f32[16,128], index: 2, kind: input, shape index: {}]
  %s3 = inlined_call_operand.hbm [shape: f32[8,256], index: 3, kind: output, shape index: {}]
  %s4 = sld [smem:[#allocation0]]
  $region26: #{tpu_custom_call.1} parent=0
    _
  %s6 = ssub.s32 1, %s4
  %s7 = scalar_select 0, %s6, %s4
  %8 = sst [smem:[#allocation3]] %s0
  $region1: #{tpu_custom_call.1} parent=0
    #allocation4 [shape = 'u8[8192]{0}', space=vmem, size = 0x2000, scoped, tag = 'input window, operand 1, single buffered']
    #allocation5 [shape = 's32[1]{0}', space=sflag, size = 0x4, scoped, tag = 'scoped memory for tpu_custom_call.1']
    #allocation6 [shape = 's32[1]{0}', space=sflag, size = 0x4, scoped, tag = 'scoped memory for tpu_custom_call.1']
    #allocation7 [shape = 'u8[4096]{0}', space=vmem, size = 0x1000, scoped, tag = 'input window, operand 2, single buffered']
    #allocation8 [shape = 's32[1]{0}', space=sflag, size = 0x4, scoped, tag = 'scoped memory for tpu_custom_call.1']
    #allocation9 [shape = 'u8[8192]{0}', space=vmem, size = 0x2000, scoped, tag = 'output window, operand 0, single buffered']
    %9 = vsyncpa [#allocation5], 0
    %10 = vsyncpa [#allocation8], 0
    %11 = vsyncpa [#allocation6], 0
    // Predicated region
    $region2: #{tpu_custom_call.1} parent=1 // pred_check
      _
    $region3: #{tpu_custom_call.1} parent=1 // pred_check_branch
      %13 = sbr.rel (0) target = $region5
    $region4: #{tpu_custom_call.1} parent=1 // pred_region
      %15 = vsyncadd [#allocation5], 0
      %s17 = sshll.u32 %s1, 4
      %s18 = int_to_ptr.hbm [resolvable:$true] %s17
      %s19 = sshll.u32 [#allocation4], 4
      %s20 = int_to_ptr.vmem [resolvable:$true] %s19
      %22 = dma.hbm_to_vmem [thread:$0]  %s18, 256, %s20, [#allocation5]
    $region5: #{tpu_custom_call.1} parent=1 // pred_fallthru
      _
    // Predicated region
    $region6: #{tpu_custom_call.1} parent=1 // pred_check
      _
    $region7: #{tpu_custom_call.1} parent=1 // pred_check_branch
      %24 = sbr.rel (0) target = $region9
    $region8: #{tpu_custom_call.1} parent=1 // pred_region
      %26 = vsyncadd [#allocation8], 0
      %s28 = sshll.u32 %s2, 4
      %s29 = int_to_ptr.hbm [resolvable:$true] %s28
      %s30 = sshll.u32 [#allocation7], 4
      %s31 = int_to_ptr.vmem [resolvable:$true] %s30
      %33 = dma.hbm_to_vmem [thread:$0]  %s29, 128, %s31, [#allocation8]
    $region9: #{tpu_custom_call.1} parent=1 // pred_fallthru
      _
    // Predicated region
    $region10: #{tpu_custom_call.1} parent=1 // pred_check
      _
    $region11: #{tpu_custom_call.1} parent=1 // pred_check_branch
      %35 = sbr.rel (0) target = $region13
    $region12: #{tpu_custom_call.1} parent=1 // pred_region
      %37 = dma.done [#allocation5], 256
    $region13: #{tpu_custom_call.1} parent=1 // pred_fallthru
      _
    // Predicated region
    $region14: #{tpu_custom_call.1} parent=1 // pred_check
      _
    $region15: #{tpu_custom_call.1} parent=1 // pred_check_branch
      %39 = sbr.rel (0) target = $region17
    $region16: #{tpu_custom_call.1} parent=1 // pred_region
      %41 = dma.done [#allocation8], 128
    $region17: #{tpu_custom_call.1} parent=1 // pred_fallthru
      _
    %v42 = vld [vmem:[#allocation4] sm:$0xff]
    %v43 = vld [vmem:[#allocation4 + $0x8] sm:$0xff]
    %v44 = vld [vmem:[#allocation7] sm:$0xff]
    %v45 = vadd.f32 %v42, %v44
    %v46 = vadd.f32 %v43, %v44
    %47 = vst [vmem:[#allocation9] sm:$0xff] %v45
    %48 = vst [vmem:[#allocation9 + $0x8] sm:$0xff] %v46
    // Predicated region
    $region18: #{tpu_custom_call.1} parent=1 // pred_check
      _
    $region19: #{tpu_custom_call.1} parent=1 // pred_check_branch
      %50 = sbr.rel (0) target = $region21
    $region20: #{tpu_custom_call.1} parent=1 // pred_region
      %52 = vsyncadd [#allocation6], 0
      %s54 = sshll.u32 [#allocation9], 4
      %s55 = int_to_ptr.vmem [resolvable:$true] %s54
      %s56 = sshll.u32 %s3, 4
      %s57 = int_to_ptr.hbm [resolvable:$true] %s56
      %59 = dma.vmem_to_hbm [thread:$0]  %s55, 256, %s57, [#allocation6]
    $region21: #{tpu_custom_call.1} parent=1 // pred_fallthru
      _
    // Predicated region
    $region22: #{tpu_custom_call.1} parent=1 // pred_check
      _
    $region23: #{tpu_custom_call.1} parent=1 // pred_check_branch
      %61 = sbr.rel (0) target = $region25
    $region24: #{tpu_custom_call.1} parent=1 // pred_region
      %63 = dma.done [#allocation6], 256
    $region25: #{tpu_custom_call.1} parent=1 // pred_fallthru
      _
    %64 = vsyncpa [#allocation5], 1
    %65 = vsyncpa [#allocation8], 1
    %66 = vsyncpa [#allocation6], 1

</llo_original>
